<compile_context>
chip_gen: v7x
topology: tpu7x:2x2x1
jax: 0.10.0
libtpu: 0.0.40
codegen_flags: <defaults>
</compile_context>

<pallas_src>
import math
import functools

import jax
import jax.numpy as jnp
from jax.experimental import pallas as pl
from jax.experimental.pallas import tpu as pltpu


def _embedder_kernel(ids_ref, table_ref, pe_ref, out_ref, *, B, S, V, TN, scale):
    """Fused: one-hot embedding gather (MXU, scale folded in) + pos-encoding add."""
    base = pl.program_id(0) * TN                                     # global row offset
    ids = ids_ref[...]                                               # (TN, 1) int32

    # Embedding gather as a one-hot matmul with sqrt(D) folded into the one-hot:
    # exact in f32 (MXU computes scale * row instead of 1.0 * row).
    tok_iota = jax.lax.broadcasted_iota(jnp.int32, (TN, V), 1)
    onehot_tok = jnp.where(tok_iota == ids, jnp.float32(scale), jnp.float32(0.0))

    # Positional-encoding rows: flat row k (global) corresponds to sequence
    # position k // B after the raw view (batch, seq) -> (seq, batch).  Built
    # with two compares (no integer division); tiny K=S matmul rides the MXU.
    row = base + jax.lax.broadcasted_iota(jnp.int32, (TN, S), 0)     # global row index
    col = jax.lax.broadcasted_iota(jnp.int32, (TN, S), 1)            # seq position s
    onehot_pos = ((row >= col * B) & (row < (col + 1) * B)).astype(jnp.float32)

    # TODO(synk): nn.Dropout(p=0.1) omitted (inference mode); training-mode dropout
    # would use pltpu.prng_seed + pltpu.stateful_bernoulli.
    out_ref[...] = (
        jnp.dot(onehot_tok, table_ref[...], preferred_element_type=jnp.float32)
        + jnp.dot(onehot_pos, pe_ref[...], preferred_element_type=jnp.float32)
    )


def embedder_forward(x, params):
    """x: (batch, seq_len) int32 token ids -> (seq_len, batch, embedding_dim) f32."""
    B, S = x.shape
    table = params["embedding"]                                      # (V, D)
    V, D = table.shape
    pe = params["pe"]                                                # (max_len, D)
    N = B * S

    if x.dtype != jnp.int32:                                         # normally a no-op
        x = x.astype(jnp.int32)
    ids = x.reshape(N, 1)                                            # free row-major view

    # Row tile: gridless-equivalent (grid=(1,)) for small N; parallel row tiles for
    # large N so v7x's second TensorCore is used and the (TN, V) one-hot stays bounded.
    if N > 1024 and N % 256 == 0:
        TN = 256
    else:
        TN = N   # TODO(synk): pad ragged large N to a multiple of 256 for the tiled path
    grid = (N // TN,)

    # Select pe[:S] via BlockSpec when S is sublane-aligned (one 4 KB DMA straight
    # out of the 2.5 MB buffer); otherwise fall back to a wrapper-side slice.
    if S % 8 == 0:
        pe_arg = pe
    else:
        pe_arg = pe[:S]
    pe_spec = pl.BlockSpec((S, D), lambda i: (0, 0))

    # VMEM budget: one-hots + resident table + pe/ids/out blocks, 2x pipeline headroom.
    need = 4 * (TN * V + TN * S + V * D + S * D + 2 * TN * D) * 2 + (1 << 20)
    vmem_limit = min(max(need, 32 << 20), 64 << 20)                  # 64 MiB = v7x physical
    # TODO(synk): once V*D*4 approaches the v7x 64 MiB VMEM, switch to an HBM-resident
    # table (memory_space=pl.ANY) with a scalar-prefetched pl.Element row-gather instead
    # of the O(N*V) one-hot + full-table DMA.

    kernel = functools.partial(
        _embedder_kernel, B=B, S=S, V=V, TN=TN, scale=math.sqrt(D))

    out_flat = pl.pallas_call(
        kernel,
        out_shape=jax.ShapeDtypeStruct((N, D), jnp.float32),
        grid=grid,
        in_specs=[
            pl.BlockSpec((TN, 1), lambda i: (i, 0)),                 # ids row tile
            pl.BlockSpec((V, D), lambda i: (0, 0)),                  # full table, resident
            pe_spec,                                                 # pe[:S]
        ],
        out_specs=pl.BlockSpec((TN, D), lambda i: (i, 0)),           # lane-dense (TN,128)
        compiler_params=pltpu.CompilerParams(
            dimension_semantics=("parallel",),
            vmem_limit_bytes=vmem_limit,
        ),
        cost_estimate=pl.CostEstimate(
            flops=2 * N * (V + S) * D,
            transcendentals=0,
            bytes_accessed=4 * (N + V * D + S * D + N * D),
        ),
    )(ids, table, pe_arg)

    # (N, D) row-major is identical to (S, B, D) row-major: free metadata reshape.
    return out_flat.reshape(S, B, D)


def init_params(key, num_embeddings=256, embedding_dim=128, max_len=5000):
    # nn.Embedding default init: N(0, 1).
    table = jax.random.normal(key, (num_embeddings, embedding_dim), jnp.float32)
    # PositionalEncoding buffer, computed once (hoisted out of the forward path).
    position = jnp.arange(max_len, dtype=jnp.float32)[:, None]       # (max_len, 1)
    div_term = jnp.exp(jnp.arange(0, embedding_dim, 2, dtype=jnp.float32)
                       * (-math.log(10000.0) / embedding_dim))       # (D/2,)
    angles = position * div_term                                     # (max_len, D/2)
    pe = jnp.zeros((max_len, embedding_dim), jnp.float32)
    pe = pe.at[:, 0::2].set(jnp.sin(angles))
    pe = pe.at[:, 1::2].set(jnp.cos(angles))
    return {"embedding": table, "pe": pe}


if __name__ == "__main__":
    BATCH, SEQ_LEN, EMB_DIM, NUM_EMB = 2, 8, 128, 256

    key = jax.random.PRNGKey(0)
    key, pkey, xkey = jax.random.split(key, 3)
    params = init_params(pkey, num_embeddings=NUM_EMB, embedding_dim=EMB_DIM)
    x = jax.random.randint(xkey, (BATCH, SEQ_LEN), 0, NUM_EMB, dtype=jnp.int32)

    out = jax.block_until_ready(embedder_forward(x, params))
    assert out.shape == (SEQ_LEN, BATCH, EMB_DIM), out.shape

    # Pure-JAX reference with the same raw-view semantics (x.view(seq, batch)).
    ids_ref = x.reshape(SEQ_LEN, BATCH)
    ref = params["embedding"][ids_ref] * math.sqrt(EMB_DIM) \
        + params["pe"][:SEQ_LEN][:, None, :]

    abs_err = float(jnp.max(jnp.abs(out - ref)))
    rel_err = abs_err / (float(jnp.max(jnp.abs(ref))) + 1e-6)
    # Tight enough that a dropped / mis-scaled positional term (O(1)) would fail.
    assert abs_err < 5e-3 and rel_err < 1e-3, (abs_err, rel_err)

    print("KERNEL_OK")
</pallas_src>

<mosaic_0001>
module attributes {stable_mosaic.version = 11 : i64} {
  func.func @_embedder_kernel(%arg0: i32, %arg1: memref<16x1xi32, #tpu.memory_space<vmem>>, %arg2: memref<256x128xf32, #tpu.memory_space<vmem>>, %arg3: memref<8x128xf32, #tpu.memory_space<vmem>>, %arg4: memref<16x128xf32, #tpu.memory_space<vmem>>) attributes {dimension_semantics = [#tpu.dimension_semantics<parallel>], iteration_bounds = array<i64: 1>, scalar_prefetch = 0 : i64, scratch_operands = 0 : i64, tpu.core_type = #tpu.core_type<tc>, window_params = [{transform_indices = @transform_0, window_bounds = array<i64: 16, 1>}, {pipeline_mode = #tpu.pipeline_mode<synchronous>, transform_indices = @transform_1, window_bounds = array<i64: 256, 128>}, {transform_indices = @transform_2, window_bounds = array<i64: 8, 128>}, {transform_indices = @transform_3, window_bounds = array<i64: 16, 128>}]} {
    %c16_i32 = arith.constant 16 : i32
    %0 = arith.muli %arg0, %c16_i32 : i32
    %c0 = arith.constant 0 : index
    %c0_0 = arith.constant 0 : index
    %1 = vector.load %arg1[%c0, %c0_0] : memref<16x1xi32, #tpu.memory_space<vmem>>, vector<16x1xi32>
    %2 = tpu.iota {dimensions = array<i32: 1>} : vector<16x256xi32>
    %3 = vector.broadcast %1 : vector<16x1xi32> to vector<16x256xi32>
    %4 = arith.cmpi eq, %2, %3 : vector<16x256xi32>
    %cst = arith.constant 11.3137083 : f32
    %cst_1 = arith.constant 0.000000e+00 : f32
    %5 = vector.broadcast %cst : f32 to vector<16x256xf32>
    %6 = vector.broadcast %cst_1 : f32 to vector<16x256xf32>
    %7 = arith.select %4, %5, %6 : vector<16x256xi1>, vector<16x256xf32>
    %8 = tpu.iota {dimensions = array<i32: 0>} : vector<16x8xi32>
    %9 = vector.broadcast %0 : i32 to vector<16x8xi32>
    %10 = arith.addi %9, %8 : vector<16x8xi32>
    %11 = tpu.iota {dimensions = array<i32: 1>} : vector<16x8xi32>
    %c2_i32 = arith.constant 2 : i32
    %12 = vector.broadcast %c2_i32 : i32 to vector<16x8xi32>
    %13 = arith.muli %11, %12 : vector<16x8xi32>
    %14 = arith.cmpi sge, %10, %13 : vector<16x8xi32>
    %c1_i32 = arith.constant 1 : i32
    %15 = vector.broadcast %c1_i32 : i32 to vector<16x8xi32>
    %16 = arith.addi %11, %15 : vector<16x8xi32>
    %c2_i32_2 = arith.constant 2 : i32
    %17 = vector.broadcast %c2_i32_2 : i32 to vector<16x8xi32>
    %18 = arith.muli %16, %17 : vector<16x8xi32>
    %19 = arith.cmpi slt, %10, %18 : vector<16x8xi32>
    %20 = arith.andi %14, %19 : vector<16x8xi1>
    %21 = arith.extui %20 : vector<16x8xi1> to vector<16x8xi32>
    %22 = arith.sitofp %21 : vector<16x8xi32> to vector<16x8xf32>
    %c0_3 = arith.constant 0 : index
    %c0_4 = arith.constant 0 : index
    %23 = vector.load %arg2[%c0_3, %c0_4] : memref<256x128xf32, #tpu.memory_space<vmem>>, vector<256x128xf32>
    %cst_5 = arith.constant dense<0.000000e+00> : vector<16x128xf32>
    %24 = tpu.matmul %7, %23, %cst_5 {dimension_numbers = #tpu.dot_dimension_numbers<[1], [0], [0], [1], [0, 0, 1, 1], [], []>} : vector<16x256xf32>, vector<256x128xf32>, vector<16x128xf32> -> vector<16x128xf32>
    %c0_6 = arith.constant 0 : index
    %c0_7 = arith.constant 0 : index
    %25 = vector.load %arg3[%c0_6, %c0_7] : memref<8x128xf32, #tpu.memory_space<vmem>>, vector<8x128xf32>
    %cst_8 = arith.constant dense<0.000000e+00> : vector<16x128xf32>
    %26 = tpu.matmul %22, %25, %cst_8 {dimension_numbers = #tpu.dot_dimension_numbers<[1], [0], [0], [1], [0, 0, 1, 1], [], []>} : vector<16x8xf32>, vector<8x128xf32>, vector<16x128xf32> -> vector<16x128xf32>
    %27 = arith.addf %24, %26 : vector<16x128xf32>
    %c0_9 = arith.constant 0 : index
    %c0_10 = arith.constant 0 : index
    %28 = vector.load %arg4[%c0_9, %c0_10] : memref<16x128xf32, #tpu.memory_space<vmem>>, vector<16x128xf32>
    tpu.vector_store %arg4[%c0_9, %c0_10], %27 {strides = array<i32>} : memref<16x128xf32, #tpu.memory_space<vmem>>, vector<16x128xf32>,
    return
  }
  func.func @transform_0(%arg0: i32) -> (i32, i32) {
    %c0_i32 = arith.constant 0 : i32
    %c0_i32_0 = arith.constant 0 : i32
    return %arg0, %c0_i32 : i32, i32
  }
  func.func @transform_1(%arg0: i32) -> (i32, i32) {
    %c0_i32 = arith.constant 0 : i32
    %c0_i32_0 = arith.constant 0 : i32
    %c0_i32_1 = arith.constant 0 : i32
    return %c0_i32, %c0_i32_0 : i32, i32
  }
  func.func @transform_2(%arg0: i32) -> (i32, i32) {
    %c0_i32 = arith.constant 0 : i32
    %c0_i32_0 = arith.constant 0 : i32
    %c0_i32_1 = arith.constant 0 : i32
    return %c0_i32, %c0_i32_0 : i32, i32
  }
  func.func @transform_3(%arg0: i32) -> (i32, i32) {
    %c0_i32 = arith.constant 0 : i32
    %c0_i32_0 = arith.constant 0 : i32
    return %arg0, %c0_i32 : i32, i32
  }
}

</mosaic_0001>

<llo_original>
// kernel: tpu_custom_call.1
$region0: #{tpu_custom_call.1}
  #allocation0 [shape = 'u32[]', space=smem, size = 0x4, offset = 0x4, fixed_abs, tag = 'smem constant byte address 0x4 - core index']
  #allocation1 [shape = 'u32[144,128]{1,0:T(1,128)}', space=vmem, size = 0x12000, scoped, tag = 'internal scratch']
  %s0 = inlined_call_operand.vmem [shape: s32[16,1], index: 0, kind: input, shape index: {}]
  %s1 = inlined_call_operand.hbm [shape: f32[256,128], index: 1, kind: input, shape index: {}]
  %s2 = inlined_call_operand.hbm [shape: f32[5000,128], index: 2, kind: input, shape index: {}]
  %s3 = inlined_call_operand.hbm [shape: f32[16,128], index: 3, kind: output, shape index: {}]
  %s4 = sld [smem:[#allocation0]]
  $region30: #{tpu_custom_call.1} parent=0
    _
  %s6 = ssub.s32 1, %s4
  %s7 = scalar_select 0, %s6, %s4
  $region1: #{tpu_custom_call.1} parent=0
    #allocation2 [shape = 'u8[131072]{0}', space=vmem, size = 0x20000, scoped, tag = 'input window, operand 1, single buffered']
    #allocation3 [shape = 's32[1]{0}', space=sflag, size = 0x4, scoped, tag = 'scoped memory for tpu_custom_call.1']
    #allocation4 [shape = 's32[1]{0}', space=sflag, size = 0x4, scoped, tag = 'scoped memory for tpu_custom_call.1']
    #allocation5 [shape = 'u8[4096]{0}', space=vmem, size = 0x1000, scoped, tag = 'input window, operand 2, single buffered']
    #allocation6 [shape = 's32[1]{0}', space=sflag, size = 0x4, scoped, tag = 'scoped memory for tpu_custom_call.1']
    #allocation7 [shape = 'u8[8192]{0}', space=vmem, size = 0x2000, scoped, tag = 'output window, operand 0, single buffered']
    %8 = vsyncpa [#allocation3], 0
    %9 = vsyncpa [#allocation6], 0
    %10 = vsyncpa [#allocation4], 0
    // Predicated region
    $region2: #{tpu_custom_call.1} parent=1 // pred_check
      _
    $region3: #{tpu_custom_call.1} parent=1 // pred_check_branch
      %12 = sbr.rel (0) target = $region5
    $region4: #{tpu_custom_call.1} parent=1 // pred_region
      _
    $region5: #{tpu_custom_call.1} parent=1 // pred_fallthru
      _
    // Predicated region
    $region6: #{tpu_custom_call.1} parent=1 // pred_check
      _
    $region7: #{tpu_custom_call.1} parent=1 // pred_check_branch
      %14 = sbr.rel (0) target = $region9
    $region8: #{tpu_custom_call.1} parent=1 // pred_region
      %s16 = ssub.s32 4096, 4096
      %17 = vsyncadd [#allocation3], %s16
      %s18 = sshll.u32 [#allocation2], 4
      %s19 = int_to_ptr.vmem [resolvable:$true] %s18
      %24 = dma.hbm_to_vmem [thread:$0]  %s1, 4096, %s19, [#allocation3], 128, 128, 8
    $region9: #{tpu_custom_call.1} parent=1 // pred_fallthru
      _
    // Predicated region
    $region10: #{tpu_custom_call.1} parent=1 // pred_check
      _
    $region11: #{tpu_custom_call.1} parent=1 // pred_check_branch
      %26 = sbr.rel (0) target = $region13
    $region12: #{tpu_custom_call.1} parent=1 // pred_region
      %s28 = ssub.s32 128, 128
      %29 = vsyncadd [#allocation6], %s28
      %s31 = sshll.u32 [#allocation5], 4
      %s32 = int_to_ptr.vmem [resolvable:$true] %s31
      %34 = dma.hbm_to_vmem [thread:$0]  %s2, 128, %s32, [#allocation6]
    $region13: #{tpu_custom_call.1} parent=1 // pred_fallthru
      _
    // Predicated region
    $region14: #{tpu_custom_call.1} parent=1 // pred_check
      _
    $region15: #{tpu_custom_call.1} parent=1 // pred_check_branch
      %36 = sbr.rel (0) target = $region17
    $region16: #{tpu_custom_call.1} parent=1 // pred_region
      %37 = dma.done [#allocation3], 4096
    $region17: #{tpu_custom_call.1} parent=1 // pred_fallthru
      _
    // Predicated region
    $region18: #{tpu_custom_call.1} parent=1 // pred_check
      _
    $region19: #{tpu_custom_call.1} parent=1 // pred_check_branch
      %39 = sbr.rel (0) target = $region21
    $region20: #{tpu_custom_call.1} parent=1 // pred_region
      %40 = dma.done [#allocation6], 128
    $region21: #{tpu_custom_call.1} parent=1 // pred_fallthru
      _
    %s41 = smul.u32 0, 16
    %v42 = vld [vmem:[%s0] sm:$0xff]
    %v43 = vld [vmem:[%s0 + $0x8] sm:$0xff]
    %v44 = vlaneseq
    %v45 = vand.u32 %v44, 127
    %v46 = vadd.s32 %v45, 128
    %47 = vset.pattern.permute.xlu0 0
    %48 = vperm.xlu0 %47, %v42
    %v49 = vpop.permute.xlu0 %48
    %50 = vset.pattern.permute.xlu0 0
    %51 = vperm.xlu0 %50, %v43
    %v52 = vpop.permute.xlu0 %51
    %vm53 = vcmp.eq.s32.totalorder %v45, %v49
    %vm54 = vcmp.eq.s32.totalorder %v46, %v49
    %vm55 = vcmp.eq.s32.totalorder %v45, %v52
    %vm56 = vcmp.eq.s32.totalorder %v46, %v52
    %v57 = vsel %vm53, 11.313708, 0.0
    %v58 = vsel %vm54, 11.313708, 0.0
    %v59 = vsel %vm55, 11.313708, 0.0
    %v60 = vsel %vm56, 11.313708, 0.0
    %v61 = vlaneseq
    %v62 = vshrl.u32 %v61, 7
    %v63 = vadd.s32 %v62, 8
    %v64 = vstv %s41
    %v65 = vadd.s32 %v64, %v62
    %v66 = vadd.s32 %v64, %v63
    %v67 = vmul.u32 %v45, 2
    %vm68 = vcmp.ge.s32.totalorder %v65, %v67
    %vm69 = vcmp.ge.s32.totalorder %v66, %v67
    %v70 = vadd.s32 %v45, 1
    %v71 = vmul.u32 %v70, 2
    %vm72 = vcmp.lt.s32.totalorder %v65, %v71
    %vm73 = vcmp.lt.s32.totalorder %v66, %v71
    %vm74 = vmand %vm68, %vm72
    %vm75 = vmand %vm69, %vm73
    %v76 = vsel %vm74, 1, 0
    %v77 = vsel %vm75, 1, 0
    %v78 = vcvt.s32.f32 %v76
    %v79 = vcvt.s32.f32 %v77
    %v80 = vld [vmem:[#allocation2] sm:$0xff]
    %v81 = vld [vmem:[#allocation2 + $0x8] sm:$0xff]
    %v82 = vld [vmem:[#allocation2 + $0x10] sm:$0xff]
    %v83 = vld [vmem:[#allocation2 + $0x18] sm:$0xff]
    %v84 = vld [vmem:[#allocation2 + $0x20] sm:$0xff]
    %v85 = vld [vmem:[#allocation2 + $0x28] sm:$0xff]
    %v86 = vld [vmem:[#allocation2 + $0x30] sm:$0xff]
    %v87 = vld [vmem:[#allocation2 + $0x38] sm:$0xff]
    %v88 = vld [vmem:[#allocation2 + $0x40] sm:$0xff]
    %v89 = vld [vmem:[#allocation2 + $0x48] sm:$0xff]
    %v90 = vld [vmem:[#allocation2 + $0x50] sm:$0xff]
    %v91 = vld [vmem:[#allocation2 + $0x58] sm:$0xff]
    %v92 = vld [vmem:[#allocation2 + $0x60] sm:$0xff]
    %v93 = vld [vmem:[#allocation2 + $0x68] sm:$0xff]
    %v94 = vld [vmem:[#allocation2 + $0x70] sm:$0xff]
    %v95 = vld [vmem:[#allocation2 + $0x78] sm:$0xff]
    %v96 = vld [vmem:[#allocation2 + $0x80] sm:$0xff]
    %v97 = vld [vmem:[#allocation2 + $0x88] sm:$0xff]
    %v98 = vld [vmem:[#allocation2 + $0x90] sm:$0xff]
    %v99 = vld [vmem:[#allocation2 + $0x98] sm:$0xff]
    %v100 = vld [vmem:[#allocation2 + $0xa0] sm:$0xff]
    %v101 = vld [vmem:[#allocation2 + $0xa8] sm:$0xff]
    %v102 = vld [vmem:[#allocation2 + $0xb0] sm:$0xff]
    %v103 = vld [vmem:[#allocation2 + $0xb8] sm:$0xff]
    %v104 = vld [vmem:[#allocation2 + $0xc0] sm:$0xff]
    %v105 = vld [vmem:[#allocation2 + $0xc8] sm:$0xff]
    %v106 = vld [vmem:[#allocation2 + $0xd0] sm:$0xff]
    %v107 = vld [vmem:[#allocation2 + $0xd8] sm:$0xff]
    %v108 = vld [vmem:[#allocation2 + $0xe0] sm:$0xff]
    %v109 = vld [vmem:[#allocation2 + $0xe8] sm:$0xff]
    %v110 = vld [vmem:[#allocation2 + $0xf0] sm:$0xff]
    %v111 = vld [vmem:[#allocation2 + $0xf8] sm:$0xff]
    %v112 = vld [vmem:[#allocation5] sm:$0xff]
    %vm113 = vcmask 64512
    %v115 = vsel %vm113, %v78, 0
    %v118 = vsel %vm113, %v79, 0
    %120 = vmatprep.subr.mxu0 0.0
    %121 = vmatpush1.msra.mxu0 %v112
    %122 = vmatprep.subr.mxu0 0.0
    %123 = vmatpush1.msra.mxu0 0.0
    %124 = vmatprep.subr.mxu0 0.0
    %125 = vmatpush1.msra.mxu0 0.0
    %126 = vmatprep.subr.mxu0 0.0
    %127 = vmatpush1.msra.mxu0 0.0
    %128 = vmatprep.subr.mxu0 0.0
    %129 = vmatpush1.msra.mxu0 0.0
    %130 = vmatprep.subr.mxu0 0.0
    %131 = vmatpush1.msra.mxu0 0.0
    %132 = vmatprep.subr.mxu0 0.0
    %133 = vmatpush1.msra.mxu0 0.0
    %134 = vmatprep.subr.mxu0 0.0
    %135 = vmatpush1.msra.mxu0 0.0
    %136 = vmatprep.subr.mxu0 0.0
    %137 = vmatpush1.msra.mxu0 0.0
    %138 = vmatprep.subr.mxu0 0.0
    %139 = vmatpush1.msra.mxu0 0.0
    %140 = vmatprep.subr.mxu0 0.0
    %141 = vmatpush1.msra.mxu0 0.0
    %142 = vmatprep.subr.mxu0 0.0
    %143 = vmatpush1.msra.mxu0 0.0
    %144 = vmatprep.subr.mxu0 0.0
    %145 = vmatpush1.msra.mxu0 0.0
    %146 = vmatprep.subr.mxu0 0.0
    %147 = vmatpush1.msra.mxu0 0.0
    %148 = vmatprep.subr.mxu0 0.0
    %149 = vmatpush1.msra.mxu0 0.0
    %150 = vmatprep.subr.mxu0 0.0
    %151 = vmatpush1.msra.mxu0 0.0
    %152 = vmatprep.subr.mxu0 0.0
    %153 = vmatpush1.msra.mxu0 0.0
    %154 = vmatprep.subr.mxu0 0.0
    %155 = vmatpush1.msra.mxu0 0.0
    %156 = vmatprep.subr.mxu0 0.0
    %157 = vmatpush1.msra.mxu0 0.0
    %158 = vmatprep.subr.mxu0 0.0
    %159 = vmatpush1.msra.mxu0 0.0
    %160 = vmatprep.subr.mxu0 0.0
    %161 = vmatpush1.msra.mxu0 0.0
    %162 = vmatprep.subr.mxu0 0.0
    %163 = vmatpush1.msra.mxu0 0.0
    %164 = vmatprep.subr.mxu0 0.0
    %165 = vmatpush1.msra.mxu0 0.0
    %166 = vmatprep.subr.mxu0 0.0
    %167 = vmatpush1.msra.mxu0 0.0
    %168 = vmatprep.subr.mxu0 0.0
    %169 = vmatpush1.msra.mxu0 0.0
    %170 = vmatprep.subr.mxu0 0.0
    %171 = vmatpush1.msra.mxu0 0.0
    %172 = vmatprep.subr.mxu0 0.0
    %173 = vmatpush1.msra.mxu0 0.0
    %174 = vmatprep.subr.mxu0 0.0
    %175 = vmatpush1.msra.mxu0 0.0
    %176 = vmatprep.subr.mxu0 0.0
    %177 = vmatpush1.msra.mxu0 0.0
    %178 = vmatprep.subr.mxu0 0.0
    %179 = vmatpush1.msra.mxu0 0.0
    %180 = vmatprep.subr.mxu0 0.0
    %181 = vmatpush1.msra.mxu0 0.0
    %182 = vmatprep.subr.mxu0 0.0
    %183 = vmatpush1.msra.mxu0 0.0
    %184 = vmatprep.mubr.f32.mxu0 0.0
    %185 = vmatmul.mubr.f32.gmra.mrb[0].mxu0 %v115
    %v186 = vpop.f32.mrb[0].mxu0
    %v187 = vadd.f32 0.0, %v186
    %v188 = vpop.f32.mrb[0].mxu0
    %189 = vmatprep.mubr.f32.mxu0 0.0
    %190 = vmatmul.mubr.f32.gmra.mrb[0].mxu0 %v118
    %v191 = vpop.f32.mrb[0].mxu0
    %v192 = vadd.f32 0.0, %v191
    %v193 = vpop.f32.mrb[0].mxu0
    %194 = vdwg.mxu0
    %195 = vmatprep.subr.mxu0 0.0
    %196 = vmatpush1.msra.mxu0 %v80
    %197 = vmatprep.subr.mxu0 0.0
    %198 = vmatpush1.msra.mxu0 %v81
    %199 = vmatprep.subr.mxu0 0.0
    %200 = vmatpush1.msra.mxu0 %v82
    %201 = vmatprep.subr.mxu0 0.0
    %202 = vmatpush1.msra.mxu0 %v83
    %203 = vmatprep.subr.mxu0 0.0
    %204 = vmatpush1.msra.mxu0 %v84
    %205 = vmatprep.subr.mxu0 0.0
    %206 = vmatpush1.msra.mxu0 %v85
    %207 = vmatprep.subr.mxu0 0.0
    %208 = vmatpush1.msra.mxu0 %v86
    %209 = vmatprep.subr.mxu0 0.0
    %210 = vmatpush1.msra.mxu0 %v87
    %211 = vmatprep.subr.mxu0 0.0
    %212 = vmatpush1.msra.mxu0 %v88
    %213 = vmatprep.subr.mxu0 0.0
    %214 = vmatpush1.msra.mxu0 %v89
    %215 = vmatprep.subr.mxu0 0.0
    %216 = vmatpush1.msra.mxu0 %v90
    %217 = vmatprep.subr.mxu0 0.0
    %218 = vmatpush1.msra.mxu0 %v91
    %219 = vmatprep.subr.mxu0 0.0
    %220 = vmatpush1.msra.mxu0 %v92
    %221 = vmatprep.subr.mxu0 0.0
    %222 = vmatpush1.msra.mxu0 %v93
    %223 = vmatprep.subr.mxu0 0.0
    %224 = vmatpush1.msra.mxu0 %v94
    %225 = vmatprep.subr.mxu0 0.0
    %226 = vmatpush1.msra.mxu0 %v95
    %227 = vmatprep.subr.mxu0 0.0
    %228 = vmatpush1.msra.mxu0 %v96
    %229 = vmatprep.subr.mxu0 0.0
    %230 = vmatpush1.msra.mxu0 %v97
    %231 = vmatprep.subr.mxu0 0.0
    %232 = vmatpush1.msra.mxu0 %v98
    %233 = vmatprep.subr.mxu0 0.0
    %234 = vmatpush1.msra.mxu0 %v99
    %235 = vmatprep.subr.mxu0 0.0
    %236 = vmatpush1.msra.mxu0 %v100
    %237 = vmatprep.subr.mxu0 0.0
    %238 = vmatpush1.msra.mxu0 %v101
    %239 = vmatprep.subr.mxu0 0.0
    %240 = vmatpush1.msra.mxu0 %v102
    %241 = vmatprep.subr.mxu0 0.0
    %242 = vmatpush1.msra.mxu0 %v103
    %243 = vmatprep.subr.mxu0 0.0
    %244 = vmatpush1.msra.mxu0 %v104
    %245 = vmatprep.subr.mxu0 0.0
    %246 = vmatpush1.msra.mxu0 %v105
    %247 = vmatprep.subr.mxu0 0.0
    %248 = vmatpush1.msra.mxu0 %v106
    %249 = vmatprep.subr.mxu0 0.0
    %250 = vmatpush1.msra.mxu0 %v107
    %251 = vmatprep.subr.mxu0 0.0
    %252 = vmatpush1.msra.mxu0 %v108
    %253 = vmatprep.subr.mxu0 0.0
    %254 = vmatpush1.msra.mxu0 %v109
    %255 = vmatprep.subr.mxu0 0.0
    %256 = vmatpush1.msra.mxu0 %v110
    %257 = vmatprep.subr.mxu0 0.0
    %258 = vmatpush1.msra.mxu0 %v111
    %259 = vmatprep.mubr.f32.mxu0 %v58
    %260 = vmatmul.mubr.f32.gmra.mrb[0].mxu0 %v57
    %v261 = vpop.f32.mrb[0].mxu0
    %v262 = vadd.f32 %v187, %v261
    %v263 = vpop.f32.mrb[0].mxu0
    %264 = vmatprep.mubr.f32.mxu0 %v60
    %265 = vmatmul.mubr.f32.gmra.mrb[0].mxu0 %v59
    %v266 = vpop.f32.mrb[0].mxu0
    %v267 = vadd.f32 %v192, %v266
    %v268 = vpop.f32.mrb[0].mxu0
    %269 = vdwg.mxu0
    %270 = vst [vmem:[#allocation7] sm:$0xff] %v262
    %271 = vst [vmem:[#allocation7 + $0x8] sm:$0xff] %v267
    // Predicated region
    $region22: #{tpu_custom_call.1} parent=1 // pred_check
      _
    $region23: #{tpu_custom_call.1} parent=1 // pred_check_branch
      %273 = sbr.rel (0) target = $region25
    $region24: #{tpu_custom_call.1} parent=1 // pred_region
      %s275 = ssub.s32 256, 256
      %276 = vsyncadd [#allocation4], %s275
      %s277 = sshll.u32 [#allocation7], 4
      %s278 = int_to_ptr.vmem [resolvable:$true] %s277
      %283 = dma.vmem_to_hbm [thread:$0]  %s278, 256, %s3, [#allocation4], 128, 128, 8
    $region25: #{tpu_custom_call.1} parent=1 // pred_fallthru
      _
    // Predicated region
    $region26: #{tpu_custom_call.1} parent=1 // pred_check
      _
    $region27: #{tpu_custom_call.1} parent=1 // pred_check_branch
      %285 = sbr.rel (0) target = $region29
    $region28: #{tpu_custom_call.1} parent=1 // pred_region
      %286 = dma.done [#allocation4], 256
    $region29: #{tpu_custom_call.1} parent=1 // pred_fallthru
      _
    %287 = vsyncpa [#allocation3], 1
    %288 = vsyncpa [#allocation6], 1
    %289 = vsyncpa [#allocation4], 1

</llo_original>
